<compile_context>
chip_gen: v7x
topology: tpu7x:2x2x1
jax: 0.10.0
libtpu: 0.0.40
codegen_flags: <defaults>
</compile_context>

<pallas_src>
import jax
import jax.numpy as jnp
from jax.experimental import pallas as pl
from jax.experimental.pallas import tpu as pltpu


def _nconv_kernel(at_ref, x_ref, o_ref):
    """at_ref: (W, V) resident; x_ref: (KB, V, TL); o_ref: (KB, W, TL)."""
    at = at_ref[...]                      # hoisted once per grid step
    kb = x_ref.shape[0]                   # static Python int (block shape)
    # Static unroll over the nc sub-batch: each k is an independent
    # (W,V) @ (V,TL) matmul on the MXU.  KB is capped in the wrapper so code
    # size stays small while the per-step DMA stays big enough to amortize
    # the ~0.35us per-grid-step overhead.
    for k in range(kb):
        o_ref[k] = jnp.dot(
            at, x_ref[k], preferred_element_type=jnp.float32
        ).astype(o_ref.dtype)


def nconv(x, A, *, block_budget_bytes=2 * 1024 * 1024, max_kb=256):
    """einsum('ncvl,vw->ncwl', x, A).  x: (N, C, V, L),  A: (V, W)."""
    N, C, V, L = x.shape
    Va, W = A.shape
    assert V == Va, "contraction dim mismatch"
    out_dtype = jnp.result_type(x.dtype, A.dtype)
    itemsize = jnp.dtype(x.dtype).itemsize
    NC = N * C

    x3 = x.reshape(NC, V, L)          # free: collapse leading dims, no copy
    A_T = jnp.transpose(A)            # tiny (W,V); resident in VMEM

    # L tiling: only if a single (V, L) slab would blow the block budget.
    # Otherwise keep full L (block dims equal to full array dims are always
    # legal regardless of the (8,128) rule, so no padding is ever needed).
    if L >= 256 and V * L * itemsize > block_budget_bytes:
        TL = max(128, (block_budget_bytes // (V * itemsize)) // 128 * 128)
        TL = min(TL, (L // 128) * 128)
    else:
        TL = L
    num_l = pl.cdiv(L, TL)

    # nc tiling: ~block_budget_bytes per x block, capped so the static unroll
    # in the kernel stays small.  (If a single (1,V,L) slab already exceeds
    # the budget we fall back to KB=1; that still fits default scoped VMEM
    # for any realistic shape.)
    KB = max(1, min(block_budget_bytes // max(1, V * TL * itemsize), max_kb, NC))
    if NC >= 2 and pl.cdiv(NC, KB) < 2:
        KB = pl.cdiv(NC, 2)           # >= 2 grid steps so both v7x TCs work
    num_nc = pl.cdiv(NC, KB)

    grid = (num_nc, num_l)

    cost = pl.CostEstimate(
        flops=2 * NC * W * V * L,
        transcendentals=0,
        bytes_accessed=itemsize * (NC * V * L + NC * W * L + V * W),
    )

    out3 = pl.pallas_call(
        _nconv_kernel,
        out_shape=jax.ShapeDtypeStruct((NC, W, L), out_dtype),
        grid_spec=pltpu.PrefetchScalarGridSpec(
            num_scalar_prefetch=0,
            grid=grid,
            in_specs=[
                pl.BlockSpec((W, V), lambda i, j: (0, 0)),        # A_T resident
                pl.BlockSpec((KB, V, TL), lambda i, j: (i, 0, j)),  # x tile
            ],
            out_specs=pl.BlockSpec((KB, W, TL), lambda i, j: (i, 0, j)),
        ),
        compiler_params=pltpu.CompilerParams(
            dimension_semantics=("parallel", "parallel"),
        ),
        cost_estimate=cost,
    )(A_T, x3)

    return out3.reshape(N, C, W, L)   # free: split leading dim, no copy


if __name__ == "__main__":
    # Small shapes consistent with the module's forward:
    # x: (batch=2, channels=4, nodes V=16, seq L=16), A: (V=16, W=16)
    key = jax.random.PRNGKey(0)
    kx, ka = jax.random.split(key)
    N, C, V, L, W = 2, 4, 16, 16, 16
    x = jax.random.normal(kx, (N, C, V, L), dtype=jnp.float32)
    A = jax.random.normal(ka, (V, W), dtype=jnp.float32)

    out = jax.block_until_ready(nconv(x, A))

    # Correctness check against plain-JAX einsum (same semantics as torch.einsum;
    # .contiguous() is a no-op in JAX).
    ref = jnp.einsum("ncvl,vw->ncwl", x, A)
    assert out.shape == (N, C, W, L)
    assert jnp.allclose(out, ref, atol=1e-4, rtol=1e-4)

    print("KERNEL_OK")
</pallas_src>

<mosaic_0001>
module attributes {stable_mosaic.version = 11 : i64} {
  func.func @_nconv_kernel(%arg0: i32, %arg1: i32, %arg2: memref<16x16xf32, #tpu.memory_space<vmem>>, %arg3: memref<4x16x16xf32, #tpu.memory_space<vmem>>, %arg4: memref<4x16x16xf32, #tpu.memory_space<vmem>>) attributes {dimension_semantics = [#tpu.dimension_semantics<parallel>, #tpu.dimension_semantics<parallel>], iteration_bounds = array<i64: 2, 1>, scalar_prefetch = 0 : i64, scratch_operands = 0 : i64, tpu.core_type = #tpu.core_type<tc>, window_params = [{pipeline_mode = #tpu.pipeline_mode<synchronous>, transform_indices = @transform_0, window_bounds = array<i64: 16, 16>}, {transform_indices = @transform_1, window_bounds = array<i64: 4, 16, 16>}, {transform_indices = @transform_2, window_bounds = array<i64: 4, 16, 16>}]} {
    %c0 = arith.constant 0 : index
    %c0_0 = arith.constant 0 : index
    %0 = vector.load %arg2[%c0, %c0_0] : memref<16x16xf32, #tpu.memory_space<vmem>>, vector<16x16xf32>
    %c0_1 = arith.constant 0 : index
    %c0_2 = arith.constant 0 : index
    %c0_3 = arith.constant 0 : index
    %1 = vector.load %arg3[%c0_1, %c0_2, %c0_3] : memref<4x16x16xf32, #tpu.memory_space<vmem>>, vector<1x16x16xf32>
    %2 = vector.shape_cast %1 : vector<1x16x16xf32> to vector<16x16xf32>
    %cst = arith.constant dense<0.000000e+00> : vector<16x16xf32>
    %3 = tpu.matmul %0, %2, %cst {dimension_numbers = #tpu.dot_dimension_numbers<[1], [0], [0], [1], [0, 0, 1, 1], [], []>} : vector<16x16xf32>, vector<16x16xf32>, vector<16x16xf32> -> vector<16x16xf32>
    %c0_4 = arith.constant 0 : index
    %c0_5 = arith.constant 0 : index
    %c0_6 = arith.constant 0 : index
    %4 = vector.load %arg4[%c0_4, %c0_5, %c0_6] : memref<4x16x16xf32, #tpu.memory_space<vmem>>, vector<1x16x16xf32>
    %5 = vector.shape_cast %4 : vector<1x16x16xf32> to vector<16x16xf32>
    %6 = vector.shape_cast %3 : vector<16x16xf32> to vector<1x16x16xf32>
    tpu.vector_store %arg4[%c0_4, %c0_5, %c0_6], %6 {strides = array<i32>} : memref<4x16x16xf32, #tpu.memory_space<vmem>>, vector<1x16x16xf32>,
    %c1 = arith.constant 1 : index
    %c0_7 = arith.constant 0 : index
    %c0_8 = arith.constant 0 : index
    %7 = vector.load %arg3[%c1, %c0_7, %c0_8] : memref<4x16x16xf32, #tpu.memory_space<vmem>>, vector<1x16x16xf32>
    %8 = vector.shape_cast %7 : vector<1x16x16xf32> to vector<16x16xf32>
    %cst_9 = arith.constant dense<0.000000e+00> : vector<16x16xf32>
    %9 = tpu.matmul %0, %8, %cst_9 {dimension_numbers = #tpu.dot_dimension_numbers<[1], [0], [0], [1], [0, 0, 1, 1], [], []>} : vector<16x16xf32>, vector<16x16xf32>, vector<16x16xf32> -> vector<16x16xf32>
    %c1_10 = arith.constant 1 : index
    %c0_11 = arith.constant 0 : index
    %c0_12 = arith.constant 0 : index
    %10 = vector.load %arg4[%c1_10, %c0_11, %c0_12] : memref<4x16x16xf32, #tpu.memory_space<vmem>>, vector<1x16x16xf32>
    %11 = vector.shape_cast %10 : vector<1x16x16xf32> to vector<16x16xf32>
    %12 = vector.shape_cast %9 : vector<16x16xf32> to vector<1x16x16xf32>
    tpu.vector_store %arg4[%c1_10, %c0_11, %c0_12], %12 {strides = array<i32>} : memref<4x16x16xf32, #tpu.memory_space<vmem>>, vector<1x16x16xf32>,
    %c2 = arith.constant 2 : index
    %c0_13 = arith.constant 0 : index
    %c0_14 = arith.constant 0 : index
    %13 = vector.load %arg3[%c2, %c0_13, %c0_14] : memref<4x16x16xf32, #tpu.memory_space<vmem>>, vector<1x16x16xf32>
    %14 = vector.shape_cast %13 : vector<1x16x16xf32> to vector<16x16xf32>
    %cst_15 = arith.constant dense<0.000000e+00> : vector<16x16xf32>
    %15 = tpu.matmul %0, %14, %cst_15 {dimension_numbers = #tpu.dot_dimension_numbers<[1], [0], [0], [1], [0, 0, 1, 1], [], []>} : vector<16x16xf32>, vector<16x16xf32>, vector<16x16xf32> -> vector<16x16xf32>
    %c2_16 = arith.constant 2 : index
    %c0_17 = arith.constant 0 : index
    %c0_18 = arith.constant 0 : index
    %16 = vector.load %arg4[%c2_16, %c0_17, %c0_18] : memref<4x16x16xf32, #tpu.memory_space<vmem>>, vector<1x16x16xf32>
    %17 = vector.shape_cast %16 : vector<1x16x16xf32> to vector<16x16xf32>
    %18 = vector.shape_cast %15 : vector<16x16xf32> to vector<1x16x16xf32>
    tpu.vector_store %arg4[%c2_16, %c0_17, %c0_18], %18 {strides = array<i32>} : memref<4x16x16xf32, #tpu.memory_space<vmem>>, vector<1x16x16xf32>,
    %c3 = arith.constant 3 : index
    %c0_19 = arith.constant 0 : index
    %c0_20 = arith.constant 0 : index
    %19 = vector.load %arg3[%c3, %c0_19, %c0_20] : memref<4x16x16xf32, #tpu.memory_space<vmem>>, vector<1x16x16xf32>
    %20 = vector.shape_cast %19 : vector<1x16x16xf32> to vector<16x16xf32>
    %cst_21 = arith.constant dense<0.000000e+00> : vector<16x16xf32>
    %21 = tpu.matmul %0, %20, %cst_21 {dimension_numbers = #tpu.dot_dimension_numbers<[1], [0], [0], [1], [0, 0, 1, 1], [], []>} : vector<16x16xf32>, vector<16x16xf32>, vector<16x16xf32> -> vector<16x16xf32>
    %c3_22 = arith.constant 3 : index
    %c0_23 = arith.constant 0 : index
    %c0_24 = arith.constant 0 : index
    %22 = vector.load %arg4[%c3_22, %c0_23, %c0_24] : memref<4x16x16xf32, #tpu.memory_space<vmem>>, vector<1x16x16xf32>
    %23 = vector.shape_cast %22 : vector<1x16x16xf32> to vector<16x16xf32>
    %24 = vector.shape_cast %21 : vector<16x16xf32> to vector<1x16x16xf32>
    tpu.vector_store %arg4[%c3_22, %c0_23, %c0_24], %24 {strides = array<i32>} : memref<4x16x16xf32, #tpu.memory_space<vmem>>, vector<1x16x16xf32>,
    return
  }
  func.func @transform_0(%arg0: i32, %arg1: i32) -> (i32, i32) {
    %c0_i32 = arith.constant 0 : i32
    %c0_i32_0 = arith.constant 0 : i32
    %c0_i32_1 = arith.constant 0 : i32
    return %c0_i32, %c0_i32_0 : i32, i32
  }
  func.func @transform_1(%arg0: i32, %arg1: i32) -> (i32, i32, i32) {
    %c0_i32 = arith.constant 0 : i32
    %c0_i32_0 = arith.constant 0 : i32
    return %arg0, %c0_i32, %arg1 : i32, i32, i32
  }
  func.func @transform_2(%arg0: i32, %arg1: i32) -> (i32, i32, i32) {
    %c0_i32 = arith.constant 0 : i32
    %c0_i32_0 = arith.constant 0 : i32
    return %arg0, %c0_i32, %arg1 : i32, i32, i32
  }
}

</mosaic_0001>

<llo_original>
// kernel: tpu_custom_call.1
$region0: #{tpu_custom_call.1}
  #allocation0 [shape = 'u32[]', space=smem, size = 0x4, offset = 0x4, fixed_abs, tag = 'smem constant byte address 0x4 - core index']
  #allocation1 [shape = 'u32[144,128]{1,0:T(1,128)}', space=vmem, size = 0x12000, scoped, tag = 'internal scratch']
  %s0 = inlined_call_operand.hbm [shape: f32[16,16], index: 0, kind: input, shape index: {}]
  %s1 = inlined_call_operand.hbm [shape: f32[8,16,16], index: 1, kind: input, shape index: {}]
  %s2 = inlined_call_operand.hbm [shape: f32[8,16,16], index: 2, kind: output, shape index: {}]
  %s3 = sld [smem:[#allocation0]]
  $region49: #{tpu_custom_call.1} parent=0
    _
  %s5 = ssub.s32 1, %s3
  %s6 = scalar_select 0, %s5, %s3
  $region1: #{tpu_custom_call.1} parent=0
    #allocation2 [shape = 'u8[8192]{0}', space=vmem, size = 0x2000, scoped, tag = 'input window, operand 0, single buffered']
    #allocation3 [shape = 's32[2]{0}', space=sflag, size = 0x8, scoped, tag = 'scoped memory for tpu_custom_call.1']
    #allocation4 [shape = 's32[2]{0}', space=sflag, size = 0x8, scoped, tag = 'scoped memory for tpu_custom_call.1']
    #allocation5 [shape = 'u8[65536]{0}', space=vmem, size = 0x10000, scoped, tag = 'input window, operand 1']
    #allocation6 [shape = 's32[2]{0}', space=sflag, size = 0x8, scoped, tag = 'scoped memory for tpu_custom_call.1']
    #allocation7 [shape = 'u8[65536]{0}', space=vmem, size = 0x10000, scoped, tag = 'output window, operand 0']
    %7 = vsyncpa [#allocation3], 0
    %8 = vsyncpa [#allocation6], 0
    %s9 = scalar_lea.sflag [#allocation6], 1
    %10 = vsyncpa %s9, 0
    %11 = vsyncpa [#allocation4], 0
    %s12 = scalar_lea.sflag [#allocation4], 1
    %13 = vsyncpa %s12, 0
    loop: start=0, step=1, limit=4
    $region2: #{tpu_custom_call.1} parent=1 // loop_pre_header
      _
    $region3: #{tpu_custom_call.1} parent=1 // loop_header
      %s15 = sphi 0, %s19
      %p16 = scmp.ge.s32.totalorder %s15, 4
      %s22 = sphi 0, %s34
      %s23 = sphi 0, %s30
      %s24 = sphi 0, %s22
      %s25 = sphi 0, %s23
      %s26 = sphi 0, %s24
      %s27 = sphi 0, %s25
      %s35 = sphi 0, %s35
      %s37 = sphi 0, %s35
      %s38 = sphi 0, %s37
      %s52 = sphi 0, %s38
      %s60 = sphi 0, %s62
      %s63 = sphi 0, %s60
      %s64 = sphi 0, %s63
      %s80 = sphi 0, %s64
      %s88 = sphi 0, %s90
      %s91 = sphi 0, %s88
      %s92 = sphi 0, %s91
      %s108 = sphi 0, %s92
    $region4: #{tpu_custom_call.1} parent=1 // loop_header_branch
      %18 = sbr.rel (%p16) target = $region8
    $region5: #{tpu_custom_call.1} parent=1 // loop_body
      %s20 = ssub.s32 %s15, 1
      %s21 = ssub.s32 %s15, 2
      %s28 = sadd.s32 1, %s23
      %p29 = scmp.ge.s32.totalorder %s28, 1
      %s30 = scalar_select %p29, 0, %s28
      %s31 = sadd.s32 1, %s22
      %s32 = scalar_select %p29, %s31, %s22
      %p33 = scmp.ge.s32.totalorder %s32, 2
      %s34 = scalar_select %p33, 0, %s32
      %s36 = sadd.s32 %s35, 1
      %p39 = scmp.eq.s32.totalorder %s15, 1
      %p40 = scmp.ne.s32.totalorder %s35, %s37
      %p41 = scmp.eq.s32.totalorder %s15, 0
      %p42 = por %p40, %p41
      %p43 = scmp.ne.s32.totalorder %s35, %s37
      %p44 = scmp.eq.s32.totalorder %s20, 1
      %p45 = por %p43, %p44
      %p46 = scmp.ne.s32.totalorder %s37, %s38
      %p47 = scmp.eq.s32.totalorder %s20, 0
      %p48 = por %p46, %p47
      %p49 = scmp.ne.s32.totalorder %s37, %s38
      %p50 = scmp.eq.s32.totalorder %s21, 1
      %p51 = por %p49, %p50
      %p53 = scmp.ne.s32.totalorder %s38, %s52
      %p54 = scmp.eq.s32.totalorder %s21, 0
      %p55 = por %p53, %p54
      %s56 = ssub.s32 %s22, %s34
      %s57 = ssub.s32 %s23, %s30
      %s58 = sor.u32 %s56, %s57
      %p59 = scmp.eq.s32.totalorder %s58, 0
      %s61 = sadd.s32 %s60, 1
      %s62 = scalar_select %p59, %s60, %s61
      %p65 = pneg %p59
      %p66 = scmp.eq.s32.totalorder %s15, 1
      %p67 = por %p65, %p66
      %p68 = scmp.ne.s32.totalorder %s60, %s63
      %p69 = scmp.eq.s32.totalorder %s15, 0
      %p70 = por %p68, %p69
      %p71 = scmp.ne.s32.totalorder %s60, %s63
      %p72 = scmp.eq.s32.totalorder %s20, 1
      %p73 = por %p71, %p72
      %p74 = scmp.ne.s32.totalorder %s63, %s64
      %p75 = scmp.eq.s32.totalorder %s20, 0
      %p76 = por %p74, %p75
      %p77 = scmp.ne.s32.totalorder %s63, %s64
      %p78 = scmp.eq.s32.totalorder %s21, 1
      %p79 = por %p77, %p78
      %p81 = scmp.ne.s32.totalorder %s64, %s80
      %p82 = scmp.eq.s32.totalorder %s21, 0
      %p83 = por %p81, %p82
      %s84 = ssub.s32 %s22, %s34
      %s85 = ssub.s32 %s23, %s30
      %s86 = sor.u32 %s84, %s85
      %p87 = scmp.eq.s32.totalorder %s86, 0
      %s89 = sadd.s32 %s88, 1
      %s90 = scalar_select %p87, %s88, %s89
      %p93 = pneg %p87
      %p94 = scmp.eq.s32.totalorder %s15, 1
      %p95 = por %p93, %p94
      %p96 = scmp.ne.s32.totalorder %s88, %s91
      %p97 = scmp.eq.s32.totalorder %s15, 0
      %p98 = por %p96, %p97
      %p99 = scmp.ne.s32.totalorder %s88, %s91
      %p100 = scmp.eq.s32.totalorder %s20, 1
      %p101 = por %p99, %p100
      %p102 = scmp.ne.s32.totalorder %s91, %s92
      %p103 = scmp.eq.s32.totalorder %s20, 0
      %p104 = por %p102, %p103
      %p105 = scmp.ne.s32.totalorder %s91, %s92
      %p106 = scmp.eq.s32.totalorder %s21, 1
      %p107 = por %p105, %p106
      %p109 = scmp.ne.s32.totalorder %s92, %s108
      %p110 = scmp.eq.s32.totalorder %s21, 0
      %p111 = por %p109, %p110
      %p112 = scmp.le.s32.totalorder 1, %s15
      %p113 = scmp.lt.s32.totalorder %s15, 3
      %p114 = pnand %p112, %p113
      %p115 = pneg %p114
      // Predicated region
      $region9: #{tpu_custom_call.1} parent=5 // pred_check
        _
      $region10: #{tpu_custom_call.1} parent=5 // pred_check_branch
        %117 = sbr.rel (%p114) target = $region12
      $region11: #{tpu_custom_call.1} parent=5 // pred_region
        %s118 = ssub.s32 %s15, 1
        // Predicated region
        $region13: #{tpu_custom_call.1} parent=11 // pred_check
          %p119 = pneg %p48
        $region14: #{tpu_custom_call.1} parent=11 // pred_check_branch
          %121 = sbr.rel (%p119) target = $region16
        $region15: #{tpu_custom_call.1} parent=11 // pred_region
          %s123 = ssub.s32 256, 256
          %124 = vsyncadd [#allocation3], %s123
          %s125 = sshll.u32 [#allocation2], 4
          %s126 = int_to_ptr.vmem [resolvable:$true] %s125
          %131 = dma.hbm_to_vmem [thread:$0]  %s0, 256, %s126, [#allocation3], 128, 128, 8
        $region16: #{tpu_custom_call.1} parent=11 // pred_fallthru
          _
      $region12: #{tpu_custom_call.1} parent=5 // pred_fallthru
        _
      %p132 = scmp.lt.s32.totalorder %s15, 2
      // Predicated region
      $region17: #{tpu_custom_call.1} parent=5 // pred_check
        %p133 = pneg %p132
      $region18: #{tpu_custom_call.1} parent=5 // pred_check_branch
        %135 = sbr.rel (%p133) target = $region20
      $region19: #{tpu_custom_call.1} parent=5 // pred_region
        // Predicated region
        $region21: #{tpu_custom_call.1} parent=19 // pred_check
          %p136 = pneg %p70
        $region22: #{tpu_custom_call.1} parent=19 // pred_check_branch
          %138 = sbr.rel (%p136) target = $region24
        $region23: #{tpu_custom_call.1} parent=19 // pred_region
          %s139 = sand.u32 %s60, 1
          %s140 = scalar_lea.sflag [#allocation6], %s139
          %s141 = sand.u32 %s60, 1
          %s142 = smul.addr %s141, 64
          %s143 = scalar_lea.vmem [#allocation5], %s142
          %s144 = smul.u32 4, %s22
          %s146 = ssub.s32 1024, 1024
          %147 = vsyncadd %s140, %s146
          %s148 = smul.addr %s144, 2
          %s149 = sadd.s32 %s23, %s148
          %s150 = smul.addr %s149, 128
          %s151 = scalar_lea.hbm %s1, %s150
          %s152 = sshll.u32 %s143, 4
          %s153 = int_to_ptr.vmem [resolvable:$true] %s152
          %158 = dma.hbm_to_vmem [thread:$0]  %s151, 1024, %s153, %s140, 128, 128, 8
        $region24: #{tpu_custom_call.1} parent=19 // pred_fallthru
          _
      $region20: #{tpu_custom_call.1} parent=5 // pred_fallthru
        _
      %p159 = scmp.le.s32.totalorder 1, %s15
      %p160 = scmp.lt.s32.totalorder %s15, 3
      %p161 = pnand %p159, %p160
      %p162 = pneg %p161
      // Predicated region
      $region25: #{tpu_custom_call.1} parent=5 // pred_check
        _
      $region26: #{tpu_custom_call.1} parent=5 // pred_check_branch
        %164 = sbr.rel (%p161) target = $region28
      $region27: #{tpu_custom_call.1} parent=5 // pred_region
        %s165 = ssub.s32 %s15, 1
        // Predicated region
        $region29: #{tpu_custom_call.1} parent=27 // pred_check
          %p166 = pneg %p48
        $region30: #{tpu_custom_call.1} parent=27 // pred_check_branch
          %168 = sbr.rel (%p166) target = $region32
        $region31: #{tpu_custom_call.1} parent=27 // pred_region
          %169 = dma.done [#allocation3], 256
        $region32: #{tpu_custom_call.1} parent=27 // pred_fallthru
          _
        %s170 = sand.u32 %s63, 1
        %s171 = scalar_lea.sflag [#allocation6], %s170
        %s172 = sand.u32 %s63, 1
        %s173 = smul.addr %s172, 64
        %s174 = scalar_lea.vmem [#allocation5], %s173
        // Predicated region
        $region33: #{tpu_custom_call.1} parent=27 // pred_check
          %p175 = pneg %p76
        $region34: #{tpu_custom_call.1} parent=27 // pred_check_branch
          %177 = sbr.rel (%p175) target = $region36
        $region35: #{tpu_custom_call.1} parent=27 // pred_region
          %178 = dma.done %s171, 1024
        $region36: #{tpu_custom_call.1} parent=27 // pred_fallthru
          _
        %p179 = pneg %p48
        %p180 = pneg %p45
        %s181 = sand.u32 %s63, 1
        %s182 = scalar_lea.sflag [#allocation6], %s181
        %s183 = sand.u32 %s63, 1
        %s184 = smul.addr %s183, 64
        %s185 = scalar_lea.vmem [#allocation5], %s184
        %p186 = pneg %p76
        %p187 = pneg %p73
        %p188 = pneg %p104
        %p189 = pneg %p101
        %s190 = sand.u32 %s91, 1
        %s191 = scalar_lea.sflag [#allocation4], %s190
        %s192 = sand.u32 %s91, 1
        %s193 = smul.addr %s192, 64
        %s194 = scalar_lea.vmem [#allocation7], %s193
        %s195 = smul.u32 4, %s24
        %s196 = smul.u32 4, %s24
        %v197 = vld [vmem:[#allocation2] sm:$0xff]
        %v198 = vld [vmem:[#allocation2 + $0x8] sm:$0xff]
        %v199 = vld [vmem:[%s174] sm:$0xff]
        %v200 = vld [vmem:[%s174 + $0x8] sm:$0xff]
        %vm201 = vcmask 130048
        %v203 = vsel %vm201, %v197, 0
        %v206 = vsel %vm201, %v198, 0
        %208 = vmatprep.subr.mxu0 0.0
        %209 = vmatpush1.msra.mxu0 %v199
        %210 = vmatprep.subr.mxu0 0.0
        %211 = vmatpush1.msra.mxu0 %v200
        %212 = vmatprep.subr.mxu0 0.0
        %213 = vmatpush1.msra.mxu0 0.0
        %214 = vmatprep.subr.mxu0 0.0
        %215 = vmatpush1.msra.mxu0 0.0
        %216 = vmatprep.subr.mxu0 0.0
        %217 = vmatpush1.msra.mxu0 0.0
        %218 = vmatprep.subr.mxu0 0.0
        %219 = vmatpush1.msra.mxu0 0.0
        %220 = vmatprep.subr.mxu0 0.0
        %221 = vmatpush1.msra.mxu0 0.0
        %222 = vmatprep.subr.mxu0 0.0
        %223 = vmatpush1.msra.mxu0 0.0
        %224 = vmatprep.subr.mxu0 0.0
        %225 = vmatpush1.msra.mxu0 0.0
        %226 = vmatprep.subr.mxu0 0.0
        %227 = vmatpush1.msra.mxu0 0.0
        %228 = vmatprep.subr.mxu0 0.0
        %229 = vmatpush1.msra.mxu0 0.0
        %230 = vmatprep.subr.mxu0 0.0
        %231 = vmatpush1.msra.mxu0 0.0
        %232 = vmatprep.subr.mxu0 0.0
        %233 = vmatpush1.msra.mxu0 0.0
        %234 = vmatprep.subr.mxu0 0.0
        %235 = vmatpush1.msra.mxu0 0.0
        %236 = vmatprep.subr.mxu0 0.0
        %237 = vmatpush1.msra.mxu0 0.0
        %238 = vmatprep.subr.mxu0 0.0
        %239 = vmatpush1.msra.mxu0 0.0
        %240 = vmatprep.subr.mxu0 0.0
        %241 = vmatpush1.msra.mxu0 0.0
        %242 = vmatprep.subr.mxu0 0.0
        %243 = vmatpush1.msra.mxu0 0.0
        %244 = vmatprep.subr.mxu0 0.0
        %245 = vmatpush1.msra.mxu0 0.0
        %246 = vmatprep.subr.mxu0 0.0
        %247 = vmatpush1.msra.mxu0 0.0
        %248 = vmatprep.subr.mxu0 0.0
        %249 = vmatpush1.msra.mxu0 0.0
        %250 = vmatprep.subr.mxu0 0.0
        %251 = vmatpush1.msra.mxu0 0.0
        %252 = vmatprep.subr.mxu0 0.0
        %253 = vmatpush1.msra.mxu0 0.0
        %254 = vmatprep.subr.mxu0 0.0
        %255 = vmatpush1.msra.mxu0 0.0
        %256 = vmatprep.subr.mxu0 0.0
        %257 = vmatpush1.msra.mxu0 0.0
        %258 = vmatprep.subr.mxu0 0.0
        %259 = vmatpush1.msra.mxu0 0.0
        %260 = vmatprep.subr.mxu0 0.0
        %261 = vmatpush1.msra.mxu0 0.0
        %262 = vmatprep.subr.mxu0 0.0
        %263 = vmatpush1.msra.mxu0 0.0
        %264 = vmatprep.subr.mxu0 0.0
        %265 = vmatpush1.msra.mxu0 0.0
        %266 = vmatprep.subr.mxu0 0.0
        %267 = vmatpush1.msra.mxu0 0.0
        %268 = vmatprep.subr.mxu0 0.0
        %269 = vmatpush1.msra.mxu0 0.0
        %270 = vmatprep.subr.mxu0 0.0
        %271 = vmatpush1.msra.mxu0 0.0
        %272 = vmatprep.mubr.f32.mxu0 0.0
        %273 = vmatmul.mubr.f32.gmra.mrb[0].mxu0 %v203
        %v274 = vpop.f32.mrb[0].mxu0
        %v275 = vadd.f32 0.0, %v274
        %v276 = vpop.f32.mrb[0].mxu0
        %277 = vmatprep.mubr.f32.mxu0 0.0
        %278 = vmatmul.mubr.f32.gmra.mrb[0].mxu0 %v206
        %v279 = vpop.f32.mrb[0].mxu0
        %v280 = vadd.f32 0.0, %v279
        %v281 = vpop.f32.mrb[0].mxu0
        %282 = vdwg.mxu0
        %283 = vst.msk [vmem:[%s194] sm:$0xff] %vm201, %v275
        %284 = vst.msk [vmem:[%s194 + $0x8] sm:$0xff] %vm201, %v280
        %s285 = scalar_lea.vmem %s174, 16 [#allocation5]
        %v286 = vld [vmem:[%s285] sm:$0xff]
        %v287 = vld [vmem:[%s285 + $0x8] sm:$0xff]
        %288 = vmatprep.subr.mxu0 0.0
        %289 = vmatpush1.msra.mxu0 %v286
        %290 = vmatprep.subr.mxu0 0.0
        %291 = vmatpush1.msra.mxu0 %v287
        %292 = vmatprep.subr.mxu0 0.0
        %293 = vmatpush1.msra.mxu0 0.0
        %294 = vmatprep.subr.mxu0 0.0
        %295 = vmatpush1.msra.mxu0 0.0
        %296 = vmatprep.subr.mxu0 0.0
        %297 = vmatpush1.msra.mxu0 0.0
        %298 = vmatprep.subr.mxu0 0.0
        %299 = vmatpush1.msra.mxu0 0.0
        %300 = vmatprep.subr.mxu0 0.0
        %301 = vmatpush1.msra.mxu0 0.0
        %302 = vmatprep.subr.mxu0 0.0
        %303 = vmatpush1.msra.mxu0 0.0
        %304 = vmatprep.subr.mxu0 0.0
        %305 = vmatpush1.msra.mxu0 0.0
        %306 = vmatprep.subr.mxu0 0.0
        %307 = vmatpush1.msra.mxu0 0.0
        %308 = vmatprep.subr.mxu0 0.0
        %309 = vmatpush1.msra.mxu0 0.0
        %310 = vmatprep.subr.mxu0 0.0
        %311 = vmatpush1.msra.mxu0 0.0
        %312 = vmatprep.subr.mxu0 0.0
        %313 = vmatpush1.msra.mxu0 0.0
        %314 = vmatprep.subr.mxu0 0.0
        %315 = vmatpush1.msra.mxu0 0.0
        %316 = vmatprep.subr.mxu0 0.0
        %317 = vmatpush1.msra.mxu0 0.0
        %318 = vmatprep.subr.mxu0 0.0
        %319 = vmatpush1.msra.mxu0 0.0
        %320 = vmatprep.subr.mxu0 0.0
        %321 = vmatpush1.msra.mxu0 0.0
        %322 = vmatprep.subr.mxu0 0.0
        %323 = vmatpush1.msra.mxu0 0.0
        %324 = vmatprep.subr.mxu0 0.0
        %325 = vmatpush1.msra.mxu0 0.0
        %326 = vmatprep.subr.mxu0 0.0
        %327 = vmatpush1.msra.mxu0 0.0
        %328 = vmatprep.subr.mxu0 0.0
        %329 = vmatpush1.msra.mxu0 0.0
        %330 = vmatprep.subr.mxu0 0.0
        %331 = vmatpush1.msra.mxu0 0.0
        %332 = vmatprep.subr.mxu0 0.0
        %333 = vmatpush1.msra.mxu0 0.0
        %334 = vmatprep.subr.mxu0 0.0
        %335 = vmatpush1.msra.mxu0 0.0
        %336 = vmatprep.subr.mxu0 0.0
        %337 = vmatpush1.msra.mxu0 0.0
        %338 = vmatprep.subr.mxu0 0.0
        %339 = vmatpush1.msra.mxu0 0.0
        %340 = vmatprep.subr.mxu0 0.0
        %341 = vmatpush1.msra.mxu0 0.0
        %342 = vmatprep.subr.mxu0 0.0
        %343 = vmatpush1.msra.mxu0 0.0
        %344 = vmatprep.subr.mxu0 0.0
        %345 = vmatpush1.msra.mxu0 0.0
        %346 = vmatprep.subr.mxu0 0.0
        %347 = vmatpush1.msra.mxu0 0.0
        %348 = vmatprep.subr.mxu0 0.0
        %349 = vmatpush1.msra.mxu0 0.0
        %350 = vmatprep.subr.mxu0 0.0
        %351 = vmatpush1.msra.mxu0 0.0
        %352 = vmatprep.mubr.f32.mxu0 0.0
        %353 = vmatmul.mubr.f32.gmra.mrb[0].mxu0 %v203
        %v354 = vpop.f32.mrb[0].mxu0
        %v355 = vadd.f32 0.0, %v354
        %v356 = vpop.f32.mrb[0].mxu0
        %357 = vmatprep.mubr.f32.mxu0 0.0
        %358 = vmatmul.mubr.f32.gmra.mrb[0].mxu0 %v206
        %v359 = vpop.f32.mrb[0].mxu0
        %v360 = vadd.f32 0.0, %v359
        %v361 = vpop.f32.mrb[0].mxu0
        %362 = vdwg.mxu0
        %s363 = scalar_lea.vmem %s194, 16 [#allocation7]
        %364 = vst.msk [vmem:[%s363] sm:$0xff] %vm201, %v355
        %365 = vst.msk [vmem:[%s363 + $0x8] sm:$0xff] %vm201, %v360
        %s366 = scalar_lea.vmem %s174, 32 [#allocation5]
        %v367 = vld [vmem:[%s366] sm:$0xff]
        %v368 = vld [vmem:[%s366 + $0x8] sm:$0xff]
        %369 = vmatprep.subr.mxu0 0.0
        %370 = vmatpush1.msra.mxu0 %v367
        %371 = vmatprep.subr.mxu0 0.0
        %372 = vmatpush1.msra.mxu0 %v368
        %373 = vmatprep.subr.mxu0 0.0
        %374 = vmatpush1.msra.mxu0 0.0
        %375 = vmatprep.subr.mxu0 0.0
        %376 = vmatpush1.msra.mxu0 0.0
        %377 = vmatprep.subr.mxu0 0.0
        %378 = vmatpush1.msra.mxu0 0.0
        %379 = vmatprep.subr.mxu0 0.0
        %380 = vmatpush1.msra.mxu0 0.0
        %381 = vmatprep.subr.mxu0 0.0
        %382 = vmatpush1.msra.mxu0 0.0
        %383 = vmatprep.subr.mxu0 0.0
        %384 = vmatpush1.msra.mxu0 0.0
        %385 = vmatprep.subr.mxu0 0.0
        %386 = vmatpush1.msra.mxu0 0.0
        %387 = vmatprep.subr.mxu0 0.0
        %388 = vmatpush1.msra.mxu0 0.0
        %389 = vmatprep.subr.mxu0 0.0
        %390 = vmatpush1.msra.mxu0 0.0
        %391 = vmatprep.subr.mxu0 0.0
        %392 = vmatpush1.msra.mxu0 0.0
        %393 = vmatprep.subr.mxu0 0.0
        %394 = vmatpush1.msra.mxu0 0.0
        %395 = vmatprep.subr.mxu0 0.0
        %396 = vmatpush1.msra.mxu0 0.0
        %397 = vmatprep.subr.mxu0 0.0
        %398 = vmatpush1.msra.mxu0 0.0
        %399 = vmatprep.subr.mxu0 0.0
        %400 = vmatpush1.msra.mxu0 0.0
        %401 = vmatprep.subr.mxu0 0.0
        %402 = vmatpush1.msra.mxu0 0.0
        %403 = vmatprep.subr.mxu0 0.0
        %404 = vmatpush1.msra.mxu0 0.0
        %405 = vmatprep.subr.mxu0 0.0
        %406 = vmatpush1.msra.mxu0 0.0
        %407 = vmatprep.subr.mxu0 0.0
        %408 = vmatpush1.msra.mxu0 0.0
        %409 = vmatprep.subr.mxu0 0.0
        %410 = vmatpush1.msra.mxu0 0.0
        %411 = vmatprep.subr.mxu0 0.0
        %412 = vmatpush1.msra.mxu0 0.0
        %413 = vmatprep.subr.mxu0 0.0
        %414 = vmatpush1.msra.mxu0 0.0
        %415 = vmatprep.subr.mxu0 0.0
        %416 = vmatpush1.msra.mxu0 0.0
        %417 = vmatprep.subr.mxu0 0.0
        %418 = vmatpush1.msra.mxu0 0.0
        %419 = vmatprep.subr.mxu0 0.0
        %420 = vmatpush1.msra.mxu0 0.0
        %421 = vmatprep.subr.mxu0 0.0
        %422 = vmatpush1.msra.mxu0 0.0
        %423 = vmatprep.subr.mxu0 0.0
        %424 = vmatpush1.msra.mxu0 0.0
        %425 = vmatprep.subr.mxu0 0.0
        %426 = vmatpush1.msra.mxu0 0.0
        %427 = vmatprep.subr.mxu0 0.0
        %428 = vmatpush1.msra.mxu0 0.0
        %429 = vmatprep.subr.mxu0 0.0
        %430 = vmatpush1.msra.mxu0 0.0
        %431 = vmatprep.subr.mxu0 0.0
        %432 = vmatpush1.msra.mxu0 0.0
        %433 = vmatprep.mubr.f32.mxu0 0.0
        %434 = vmatmul.mubr.f32.gmra.mrb[0].mxu0 %v203
        %v435 = vpop.f32.mrb[0].mxu0
        %v436 = vadd.f32 0.0, %v435
        %v437 = vpop.f32.mrb[0].mxu0
        %438 = vmatprep.mubr.f32.mxu0 0.0
        %439 = vmatmul.mubr.f32.gmra.mrb[0].mxu0 %v206
        %v440 = vpop.f32.mrb[0].mxu0
        %v441 = vadd.f32 0.0, %v440
        %v442 = vpop.f32.mrb[0].mxu0
        %443 = vdwg.mxu0
        %s444 = scalar_lea.vmem %s194, 32 [#allocation7]
        %445 = vst.msk [vmem:[%s444] sm:$0xff] %vm201, %v436
        %446 = vst.msk [vmem:[%s444 + $0x8] sm:$0xff] %vm201, %v441
        %s447 = scalar_lea.vmem %s174, 48 [#allocation5]
        %v448 = vld [vmem:[%s447] sm:$0xff]
        %v449 = vld [vmem:[%s447 + $0x8] sm:$0xff]
        %450 = vmatprep.subr.mxu0 0.0
        %451 = vmatpush1.msra.mxu0 %v448
        %452 = vmatprep.subr.mxu0 0.0
        %453 = vmatpush1.msra.mxu0 %v449
        %454 = vmatprep.subr.mxu0 0.0
        %455 = vmatpush1.msra.mxu0 0.0
        %456 = vmatprep.subr.mxu0 0.0
        %457 = vmatpush1.msra.mxu0 0.0
        %458 = vmatprep.subr.mxu0 0.0
        %459 = vmatpush1.msra.mxu0 0.0
        %460 = vmatprep.subr.mxu0 0.0
        %461 = vmatpush1.msra.mxu0 0.0
        %462 = vmatprep.subr.mxu0 0.0
        %463 = vmatpush1.msra.mxu0 0.0
        %464 = vmatprep.subr.mxu0 0.0
        %465 = vmatpush1.msra.mxu0 0.0
        %466 = vmatprep.subr.mxu0 0.0
        %467 = vmatpush1.msra.mxu0 0.0
        %468 = vmatprep.subr.mxu0 0.0
        %469 = vmatpush1.msra.mxu0 0.0
        %470 = vmatprep.subr.mxu0 0.0
        %471 = vmatpush1.msra.mxu0 0.0
        %472 = vmatprep.subr.mxu0 0.0
        %473 = vmatpush1.msra.mxu0 0.0
        %474 = vmatprep.subr.mxu0 0.0
        %475 = vmatpush1.msra.mxu0 0.0
        %476 = vmatprep.subr.mxu0 0.0
        %477 = vmatpush1.msra.mxu0 0.0
        %478 = vmatprep.subr.mxu0 0.0
        %479 = vmatpush1.msra.mxu0 0.0
        %480 = vmatprep.subr.mxu0 0.0
        %481 = vmatpush1.msra.mxu0 0.0
        %482 = vmatprep.subr.mxu0 0.0
        %483 = vmatpush1.msra.mxu0 0.0
        %484 = vmatprep.subr.mxu0 0.0
        %485 = vmatpush1.msra.mxu0 0.0
        %486 = vmatprep.subr.mxu0 0.0
        %487 = vmatpush1.msra.mxu0 0.0
        %488 = vmatprep.subr.mxu0 0.0
        %489 = vmatpush1.msra.mxu0 0.0
        %490 = vmatprep.subr.mxu0 0.0
        %491 = vmatpush1.msra.mxu0 0.0
        %492 = vmatprep.subr.mxu0 0.0
        %493 = vmatpush1.msra.mxu0 0.0
        %494 = vmatprep.subr.mxu0 0.0
        %495 = vmatpush1.msra.mxu0 0.0
        %496 = vmatprep.subr.mxu0 0.0
        %497 = vmatpush1.msra.mxu0 0.0
        %498 = vmatprep.subr.mxu0 0.0
        %499 = vmatpush1.msra.mxu0 0.0
        %500 = vmatprep.subr.mxu0 0.0
        %501 = vmatpush1.msra.mxu0 0.0
        %502 = vmatprep.subr.mxu0 0.0
        %503 = vmatpush1.msra.mxu0 0.0
        %504 = vmatprep.subr.mxu0 0.0
        %505 = vmatpush1.msra.mxu0 0.0
        %506 = vmatprep.subr.mxu0 0.0
        %507 = vmatpush1.msra.mxu0 0.0
        %508 = vmatprep.subr.mxu0 0.0
        %509 = vmatpush1.msra.mxu0 0.0
        %510 = vmatprep.subr.mxu0 0.0
        %511 = vmatpush1.msra.mxu0 0.0
        %512 = vmatprep.subr.mxu0 0.0
        %513 = vmatpush1.msra.mxu0 0.0
        %514 = vmatprep.mubr.f32.mxu0 0.0
        %515 = vmatmul.mubr.f32.gmra.mrb[0].mxu0 %v203
        %v516 = vpop.f32.mrb[0].mxu0
        %v517 = vadd.f32 0.0, %v516
        %v518 = vpop.f32.mrb[0].mxu0
        %519 = vmatprep.mubr.f32.mxu0 0.0
        %520 = vmatmul.mubr.f32.gmra.mrb[0].mxu0 %v206
        %v521 = vpop.f32.mrb[0].mxu0
        %v522 = vadd.f32 0.0, %v521
        %v523 = vpop.f32.mrb[0].mxu0
        %524 = vdwg.mxu0
        %s525 = scalar_lea.vmem %s194, 48 [#allocation7]
        %526 = vst.msk [vmem:[%s525] sm:$0xff] %vm201, %v517
        %527 = vst.msk [vmem:[%s525 + $0x8] sm:$0xff] %vm201, %v522
        %s528 = sand.u32 %s91, 1
        %s529 = scalar_lea.sflag [#allocation4], %s528
        %s530 = sand.u32 %s91, 1
        %s531 = smul.addr %s530, 64
        %s532 = scalar_lea.vmem [#allocation7], %s531
        // Predicated region
        $region37: #{tpu_custom_call.1} parent=27 // pred_check
          %p533 = pneg %p101
        $region38: #{tpu_custom_call.1} parent=27 // pred_check_branch
          %535 = sbr.rel (%p533) target = $region40
        $region39: #{tpu_custom_call.1} parent=27 // pred_region
          %s536 = smul.u32 4, %s24
          %s538 = ssub.s32 1024, 1024
          %539 = vsyncadd %s529, %s538
          %s540 = smul.addr %s536, 2
          %s541 = sadd.s32 %s25, %s540
          %s542 = smul.addr %s541, 128
          %s543 = scalar_lea.hbm %s2, %s542
          %s544 = sshll.u32 %s532, 4
          %s545 = int_to_ptr.vmem [resolvable:$true] %s544
          %550 = dma.vmem_to_hbm [thread:$0]  %s545, 1024, %s543, %s529, 128, 128, 8
        $region40: #{tpu_custom_call.1} parent=27 // pred_fallthru
          _
      $region28: #{tpu_custom_call.1} parent=5 // pred_fallthru
        _
      %p551 = scmp.le.s32.totalorder 2, %s15
      // Predicated region
      $region41: #{tpu_custom_call.1} parent=5 // pred_check
        %p552 = pneg %p551
      $region42: #{tpu_custom_call.1} parent=5 // pred_check_branch
        %554 = sbr.rel (%p552) target = $region44
      $region43: #{tpu_custom_call.1} parent=5 // pred_region
        %s555 = ssub.s32 %s15, 2
        // Predicated region
        $region45: #{tpu_custom_call.1} parent=43 // pred_check
          %p556 = pneg %p107
        $region46: #{tpu_custom_call.1} parent=43 // pred_check_branch
          %558 = sbr.rel (%p556) target = $region48
        $region47: #{tpu_custom_call.1} parent=43 // pred_region
          %s559 = sand.u32 %s92, 1
          %s560 = scalar_lea.sflag [#allocation4], %s559
          %s561 = sand.u32 %s92, 1
          %s562 = smul.addr %s561, 64
          %s563 = scalar_lea.vmem [#allocation7], %s562
          %564 = dma.done %s560, 1024
        $region48: #{tpu_custom_call.1} parent=43 // pred_fallthru
          _
      $region44: #{tpu_custom_call.1} parent=5 // pred_fallthru
        _
    $region6: #{tpu_custom_call.1} parent=1 // loop_footer
      %s19 = sadd.s32 1, %s15
    $region7: #{tpu_custom_call.1} parent=1 // loop_footer_branch
      %14 = sbr.rel target = $region3
    $region8: #{tpu_custom_call.1} parent=1 // loop_exit
      _
    %565 = vsyncpa [#allocation3], 1
    %s566 = scalar_lea.sflag [#allocation3], 1
    %567 = vsyncpa %s566, 1
    %568 = vsyncpa [#allocation6], 1
    %s569 = scalar_lea.sflag [#allocation6], 1
    %570 = vsyncpa %s569, 1
    %571 = vsyncpa [#allocation4], 1
    %s572 = scalar_lea.sflag [#allocation4], 1
    %573 = vsyncpa %s572, 1

</llo_original>
